<compile_context>
chip_gen: v7x
topology: tpu7x:2x2x1
jax: 0.10.0
libtpu: 0.0.40
codegen_flags: <defaults>
</compile_context>

<pallas_src>
import jax
import jax.numpy as jnp
from jax.experimental import pallas as pl
from jax.experimental.pallas import tpu as pltpu


def _dma_copy_kernel(x_hbm, o_hbm):
    # One full-ref HBM->HBM DMA: reads+writes exactly 2x total bytes and runs
    # at the HBM-bandwidth roofline; no VMEM staging, no vector slots used.
    def body(sem):
        cp = pltpu.make_async_copy(x_hbm, o_hbm, sem)
        cp.start()
        cp.wait()

    pl.run_scoped(body, pltpu.SemaphoreType.DMA)


def _unsqueezed_shape(shape, dim):
    nd = len(shape)
    if dim < 0:
        dim += nd + 1
    assert 0 <= dim <= nd, f"dim {dim} out of range for rank {nd}"
    return shape[:dim] + (1,) + shape[dim:]


def unsqueeze(x, dim):
    """Pallas-backed equivalent of torch.Tensor.unsqueeze(dim)."""
    out_shape = _unsqueezed_shape(x.shape, dim)

    total = x.size
    if total == 0:
        # Degenerate empty tensor: nothing to copy, metadata-only reshape.
        return jnp.reshape(x, out_shape)

    # Flatten to a simple contiguous 2-D view so the DMA is a single linear
    # transfer with trivial descriptors (reshape of contiguous data is free).
    if total % 128 == 0:
        flat_shape = (total // 128, 128)   # lane-dense view
    else:
        flat_shape = (1, total)            # still one contiguous DMA
    x_flat = jnp.reshape(x, flat_shape)

    out_flat = pl.pallas_call(
        _dma_copy_kernel,
        out_shape=jax.ShapeDtypeStruct(flat_shape, x.dtype),
        in_specs=[pl.BlockSpec(memory_space=pl.ANY)],
        out_specs=pl.BlockSpec(memory_space=pl.ANY),
    )(x_flat)

    # The unsqueeze itself: zero-cost metadata reshape of contiguous data.
    return jnp.reshape(out_flat, out_shape)


class Unsqueeze:
    """Mirror of the PyTorch module: Unsqueeze(dim)(x) == x.unsqueeze(dim)."""

    def __init__(self, dim):
        self.dim = dim

    def __call__(self, x):
        return unsqueeze(x, self.dim)


if __name__ == "__main__":
    key = jax.random.PRNGKey(0)
    x = jax.random.normal(key, (2, 4, 16, 16), jnp.float32)

    # module spec: Unsqueeze(dim).forward(x) == x.unsqueeze(dim)
    for dim in (0, 1, 2, 4, -1, -3):
        out = jax.block_until_ready(Unsqueeze(dim)(x))
        ref = jnp.expand_dims(x, dim)
        assert out.shape == ref.shape, (dim, out.shape, ref.shape)
        assert bool(jnp.array_equal(out, ref)), f"value mismatch at dim={dim}"

    # robustness: total element count NOT a multiple of 128
    y = jax.random.normal(jax.random.PRNGKey(1), (3, 5, 7), jnp.float32)
    for dim in (0, 2, -1):
        out = jax.block_until_ready(unsqueeze(y, dim))
        ref = jnp.expand_dims(y, dim)
        assert out.shape == ref.shape, (dim, out.shape, ref.shape)
        assert bool(jnp.array_equal(out, ref)), f"value mismatch at dim={dim}"

    print("KERNEL_OK")
</pallas_src>

<mosaic_0001>
module attributes {stable_mosaic.version = 11 : i64} {
  func.func @_dma_copy_kernel(%arg0: memref<16x128xf32, #tpu.memory_space<any>>, %arg1: memref<16x128xf32, #tpu.memory_space<any>>) attributes {dimension_semantics = [], scalar_prefetch = 0 : i64, scratch_operands = 0 : i64, tpu.core_type = #tpu.core_type<tc>} {
    "tpu.region"() ({
      %0 = tpu.sem_alloc : memref<!tpu.dma_semaphore, #tpu.memory_space<semaphore_mem>>
      tpu.enqueue_dma source(%arg0 : memref<16x128xf32, #tpu.memory_space<any>>) target(%arg1 : memref<16x128xf32, #tpu.memory_space<any>>) target_semaphore(%0 : memref<!tpu.dma_semaphore, #tpu.memory_space<semaphore_mem>>)
      tpu.wait_dma2 semaphore(%0 : memref<!tpu.dma_semaphore, #tpu.memory_space<semaphore_mem>>) src(%arg0 : memref<16x128xf32, #tpu.memory_space<any>>) dst(%arg1 : memref<16x128xf32, #tpu.memory_space<any>>)
      tpu.yield
    }) : () -> ()
    return
  }
}

</mosaic_0001>

<llo_original>
// kernel: tpu_custom_call.1
$region0: #{tpu_custom_call.1}
  #allocation0 [shape = 'u32[]', space=smem, size = 0x4, offset = 0x4, fixed_abs, tag = 'smem constant byte address 0x4 - core index']
  #allocation1 [shape = 'u32[144,128]{1,0:T(1,128)}', space=vmem, size = 0x12000, scoped, tag = 'internal scratch']
  #allocation3 [shape = 's32[]', space=sflag, size = 0x4, offset = 0, fixed_abs, tag = 'sflag constant byte address 0x0 - dummy sync flag']
  #allocation4 [shape = 'u32[0]{0}', space=smem, size = 0, offset = 0, fixed_abs, tag = 'smem constant byte address 0x0 - null']
  %s0 = inlined_call_operand.hbm [shape: f32[16,128], index: 0, kind: input, shape index: {}]
  %s1 = inlined_call_operand.hbm [shape: f32[16,128], index: 1, kind: output, shape index: {}]
  %s2 = sld [smem:[#allocation0]]
  $region3: #{tpu_custom_call.1} parent=0
    _
  %s4 = ssub.s32 1, %s2
  %s5 = scalar_select 0, %s4, %s2
  $region2: #{tpu_custom_call.1} parent=0
    #allocation2 [shape = 's32[1]{0}', space=sflag, size = 0x4, scoped, tag = 'scoped memory for tpu_custom_call.1']
    %s7 = sshll.u32 1, 14
    %s8 = sxor.u32 4294967295, %s7
    %s11 = sshll.u32 3, 24
    %s12 = sxor.u32 4294967295, %s11
    %s13 = sand.u32 0, %s12
    %s15 = sor.u32 %s13, 0
    %18 = dma.general %s0, 256, %s1, [#allocation2], [#allocation3], [#allocation4], %s15, 0
    %s19 = smul.u32 16, 1
    %s20 = sshll.u32 %s19, 4
    %21 = dma.done [#allocation2], %s20

</llo_original>
